<compile_context>
chip_gen: v5e
topology: v5e:2x2
jax: 0.10.0
libtpu: 0.0.40
codegen_flags: <defaults>
</compile_context>

<pallas_src>
import functools

import jax
import jax.numpy as jnp
import numpy as np
from jax.experimental import pallas as pl
from jax.experimental.pallas import tpu as pltpu


def cross_attn_block_kernel(tok_ref, cls_ref, wq_ref, wk_ref, wv_ref,
                            pw_ref, pb_ref, sel_ref, selT_ref, o_ref, *, scale):
    Bt, C = cls_ref.shape
    N = tok_ref.shape[0] // Bt
    H = sel_ref.shape[-1]

    tok = tok_ref[...]                          # (Bt*N, C) bf16
    cls_f32 = cls_ref[...]                      # (Bt, C)   f32 (for the residual)
    cls = cls_f32.astype(jnp.bfloat16)          # (Bt, C)   bf16 (MXU input)

    # Projections: bf16 MXU inputs, f32 accumulation.
    k = jnp.dot(tok, wk_ref[...], preferred_element_type=jnp.float32)   # (Bt*N, C)
    v = jnp.dot(tok, wv_ref[...], preferred_element_type=jnp.float32)   # (Bt*N, C)
    q = jnp.dot(cls, wq_ref[...], preferred_element_type=jnp.float32) * scale  # (Bt, C)

    k3 = k.reshape(Bt, N, C)
    v3 = v.reshape(Bt, N, C)

    # Per-head scores via the block-diagonal selector:
    #   s[b, n, h] = sum_{c in head h} k[b, n, c] * (scale * q[b, c])
    kq = k3 * q[:, None, :]                                              # (Bt, N, C) f32
    s = jnp.dot(kq.reshape(Bt * N, C), sel_ref[...],
                preferred_element_type=jnp.float32)                      # (Bt*N, H)
    s3 = s.reshape(Bt, N, H)

    # Softmax over the token axis (all f32 elementwise math).
    m = jnp.max(s3, axis=1, keepdims=True)                               # (Bt, 1, H)
    e = jnp.exp(s3 - m)                                                  # (Bt, N, H)
    l = jnp.sum(e, axis=1, keepdims=True)                                # (Bt, 1, H)
    p = e * pl.reciprocal(l, approx=True)                                # (Bt, N, H)

    # Expand per-head probabilities back to channel width, contract over N:
    #   attn[b, c] = sum_n p[b, n, head(c)] * v[b, n, c]
    pexp = jnp.dot(p.reshape(Bt * N, H), selT_ref[...],
                   preferred_element_type=jnp.float32)                   # (Bt*N, C)
    attn = jnp.sum(pexp.reshape(Bt, N, C) * v3, axis=1)                  # (Bt, C) f32

    # Output projection (with bias) + residual with the f32 class token.
    y = jnp.dot(attn.astype(jnp.bfloat16), pw_ref[...],
                preferred_element_type=jnp.float32) + pb_ref[...]        # (Bt, C)
    o_ref[...] = (cls_f32 + y).astype(o_ref.dtype)


def cross_attention_block(x, params, num_heads, *, block_b=8):
    B, N, C = x.shape
    assert C % num_heads == 0
    hd = C // num_heads
    scale = hd ** -0.5

    # Pad batch to a multiple of block_b (padded rows are zeros and discarded).
    B_pad = ((B + block_b - 1) // block_b) * block_b
    if B_pad != B:
        x = jnp.pad(x, ((0, B_pad - B), (0, 0), (0, 0)))

    x_f32 = x.astype(jnp.float32)
    x_tok = x_f32.astype(jnp.bfloat16).reshape(B_pad * N, C)  # tokens, batch-major
    x_cls = x_f32[:, 0, :]                                    # class tokens, f32 (B_pad, C)

    wq = params["wq_t"].astype(jnp.bfloat16)
    wk = params["wk_t"].astype(jnp.bfloat16)
    wv = params["wv_t"].astype(jnp.bfloat16)
    pw = params["proj_w_t"].astype(jnp.bfloat16)
    pb = params["proj_b"].astype(jnp.float32)

    # Block-diagonal head selector: sel[c, h] = 1 iff channel c belongs to head h.
    sel = (jnp.arange(C)[:, None] // hd
           == jnp.arange(num_heads)[None, :]).astype(jnp.float32)        # (C, H)
    selT = sel.T                                                          # (H, C)

    kernel = functools.partial(cross_attn_block_kernel, scale=scale)
    wspec = pl.BlockSpec((C, C), lambda b: (0, 0))

    out = pl.pallas_call(
        kernel,
        out_shape=jax.ShapeDtypeStruct((B_pad, C), jnp.float32),
        grid=(B_pad // block_b,),
        in_specs=[
            pl.BlockSpec((block_b * N, C), lambda b: (b, 0)),  # tokens (flattened)
            pl.BlockSpec((block_b, C), lambda b: (b, 0)),      # class tokens (f32)
            wspec,                                             # wq (transposed)
            wspec,                                             # wk (transposed)
            wspec,                                             # wv (transposed)
            wspec,                                             # proj weight (transposed)
            pl.BlockSpec((1, C), lambda b: (0, 0)),            # proj bias
            pl.BlockSpec((C, num_heads), lambda b: (0, 0)),    # head selector
            pl.BlockSpec((num_heads, C), lambda b: (0, 0)),    # head selector^T
        ],
        out_specs=pl.BlockSpec((block_b, C), lambda b: (b, 0)),
        compiler_params=pltpu.CompilerParams(dimension_semantics=("parallel",)),
    )(x_tok, x_cls, wq, wk, wv, pw, pb, sel, selT)

    return out[:B].reshape(B, 1, C)


def reference_jax(x, params, num_heads):
    """Pure-JAX reference: f32 math, bf16-rounded matmul inputs (matches kernel)."""
    x = x.astype(jnp.float32)
    xb = x.astype(jnp.bfloat16).astype(jnp.float32)
    wq = params["wq_t"].astype(jnp.bfloat16).astype(jnp.float32)
    wk = params["wk_t"].astype(jnp.bfloat16).astype(jnp.float32)
    wv = params["wv_t"].astype(jnp.bfloat16).astype(jnp.float32)
    pw = params["proj_w_t"].astype(jnp.bfloat16).astype(jnp.float32)
    pb = params["proj_b"].astype(jnp.float32)

    B, N, C = x.shape
    hd = C // num_heads
    scale = hd ** -0.5
    q = xb[:, 0:1, :] @ wq                                   # (B, 1, C)
    k = xb @ wk                                              # (B, N, C)
    v = xb @ wv                                              # (B, N, C)
    q = q.reshape(B, 1, num_heads, hd).transpose(0, 2, 1, 3)
    k = k.reshape(B, N, num_heads, hd).transpose(0, 2, 1, 3)
    v = v.reshape(B, N, num_heads, hd).transpose(0, 2, 1, 3)
    attn = jnp.einsum("bhqd,bhkd->bhqk", q, k) * scale
    attn = jax.nn.softmax(attn, axis=-1)
    out = jnp.einsum("bhqk,bhkd->bhqd", attn, v)
    out = out.transpose(0, 2, 1, 3).reshape(B, 1, C)
    out = out @ pw + pb
    return x[:, 0:1, :] + out


if __name__ == "__main__":
    B, N, C, H = 2, 8, 32, 4          # batch, seq, dim, num_heads (head_dim=8)

    key = jax.random.PRNGKey(0)
    kx, kq, kk, kv, kp, kb = jax.random.split(key, 6)

    x = jax.random.normal(kx, (B, N, C), dtype=jnp.float32)
    params = {
        # stored already transposed: y = x @ W_t  (== PyTorch x @ W.T)
        "wq_t": 0.05 * jax.random.normal(kq, (C, C), dtype=jnp.float32),
        "wk_t": 0.05 * jax.random.normal(kk, (C, C), dtype=jnp.float32),
        "wv_t": 0.05 * jax.random.normal(kv, (C, C), dtype=jnp.float32),
        "proj_w_t": 0.05 * jax.random.normal(kp, (C, C), dtype=jnp.float32),
        "proj_b": 0.01 * jax.random.normal(kb, (1, C), dtype=jnp.float32),
    }

    out = cross_attention_block(x, params, num_heads=H, block_b=8)
    out = jax.block_until_ready(out)

    ref = reference_jax(x, params, num_heads=H)
    np.testing.assert_allclose(np.asarray(out), np.asarray(ref),
                               rtol=2e-2, atol=2e-2)
    print("KERNEL_OK")
</pallas_src>

<mosaic_0001>
module attributes {stable_mosaic.version = 11 : i64} {
  func.func @cross_attn_block_kernel(%arg0: i32, %arg1: memref<64x32xbf16, #tpu.memory_space<vmem>>, %arg2: memref<8x32xf32, #tpu.memory_space<vmem>>, %arg3: memref<32x32xbf16, #tpu.memory_space<vmem>>, %arg4: memref<32x32xbf16, #tpu.memory_space<vmem>>, %arg5: memref<32x32xbf16, #tpu.memory_space<vmem>>, %arg6: memref<32x32xbf16, #tpu.memory_space<vmem>>, %arg7: memref<1x32xf32, #tpu.memory_space<vmem>>, %arg8: memref<32x4xf32, #tpu.memory_space<vmem>>, %arg9: memref<4x32xf32, #tpu.memory_space<vmem>>, %arg10: memref<8x32xf32, #tpu.memory_space<vmem>>) attributes {dimension_semantics = [#tpu.dimension_semantics<parallel>], iteration_bounds = array<i64: 1>, scalar_prefetch = 0 : i64, scratch_operands = 0 : i64, tpu.core_type = #tpu.core_type<tc>, window_params = [{transform_indices = @transform_0, window_bounds = array<i64: 64, 32>}, {transform_indices = @transform_1, window_bounds = array<i64: 8, 32>}, {pipeline_mode = #tpu.pipeline_mode<synchronous>, transform_indices = @transform_2, window_bounds = array<i64: 32, 32>}, {pipeline_mode = #tpu.pipeline_mode<synchronous>, transform_indices = @transform_3, window_bounds = array<i64: 32, 32>}, {pipeline_mode = #tpu.pipeline_mode<synchronous>, transform_indices = @transform_4, window_bounds = array<i64: 32, 32>}, {pipeline_mode = #tpu.pipeline_mode<synchronous>, transform_indices = @transform_5, window_bounds = array<i64: 32, 32>}, {pipeline_mode = #tpu.pipeline_mode<synchronous>, transform_indices = @transform_6, window_bounds = array<i64: 1, 32>}, {pipeline_mode = #tpu.pipeline_mode<synchronous>, transform_indices = @transform_7, window_bounds = array<i64: 32, 4>}, {pipeline_mode = #tpu.pipeline_mode<synchronous>, transform_indices = @transform_8, window_bounds = array<i64: 4, 32>}, {transform_indices = @transform_9, window_bounds = array<i64: 8, 32>}]} {
    %c0 = arith.constant 0 : index
    %c0_0 = arith.constant 0 : index
    %0 = vector.load %arg1[%c0, %c0_0] : memref<64x32xbf16, #tpu.memory_space<vmem>>, vector<64x32xbf16>
    %c0_1 = arith.constant 0 : index
    %c0_2 = arith.constant 0 : index
    %1 = vector.load %arg2[%c0_1, %c0_2] : memref<8x32xf32, #tpu.memory_space<vmem>>, vector<8x32xf32>
    %2 = arith.truncf %1 : vector<8x32xf32> to vector<8x32xbf16>
    %c0_3 = arith.constant 0 : index
    %c0_4 = arith.constant 0 : index
    %3 = vector.load %arg4[%c0_3, %c0_4] : memref<32x32xbf16, #tpu.memory_space<vmem>>, vector<32x32xbf16>
    %cst = arith.constant dense<0.000000e+00> : vector<64x32xf32>
    %4 = tpu.matmul %0, %3, %cst {dimension_numbers = #tpu.dot_dimension_numbers<[1], [0], [0], [1], [0, 0, 1, 1], [], []>} : vector<64x32xbf16>, vector<32x32xbf16>, vector<64x32xf32> -> vector<64x32xf32>
    %c0_5 = arith.constant 0 : index
    %c0_6 = arith.constant 0 : index
    %5 = vector.load %arg5[%c0_5, %c0_6] : memref<32x32xbf16, #tpu.memory_space<vmem>>, vector<32x32xbf16>
    %cst_7 = arith.constant dense<0.000000e+00> : vector<64x32xf32>
    %6 = tpu.matmul %0, %5, %cst_7 {dimension_numbers = #tpu.dot_dimension_numbers<[1], [0], [0], [1], [0, 0, 1, 1], [], []>} : vector<64x32xbf16>, vector<32x32xbf16>, vector<64x32xf32> -> vector<64x32xf32>
    %c0_8 = arith.constant 0 : index
    %c0_9 = arith.constant 0 : index
    %7 = vector.load %arg3[%c0_8, %c0_9] : memref<32x32xbf16, #tpu.memory_space<vmem>>, vector<32x32xbf16>
    %cst_10 = arith.constant dense<0.000000e+00> : vector<8x32xf32>
    %8 = tpu.matmul %2, %7, %cst_10 {dimension_numbers = #tpu.dot_dimension_numbers<[1], [0], [0], [1], [0, 0, 1, 1], [], []>} : vector<8x32xbf16>, vector<32x32xbf16>, vector<8x32xf32> -> vector<8x32xf32>
    %cst_11 = arith.constant 0.353553385 : f32
    %9 = vector.broadcast %cst_11 : f32 to vector<8x32xf32>
    %10 = arith.mulf %8, %9 : vector<8x32xf32>
    %11 = vector.shape_cast %4 : vector<64x32xf32> to vector<8x8x32xf32>
    %12 = vector.shape_cast %6 : vector<64x32xf32> to vector<8x8x32xf32>
    %13 = vector.shape_cast %10 : vector<8x32xf32> to vector<8x1x32xf32>
    %14 = vector.broadcast %13 : vector<8x1x32xf32> to vector<8x8x32xf32>
    %15 = arith.mulf %11, %14 : vector<8x8x32xf32>
    %16 = vector.shape_cast %15 : vector<8x8x32xf32> to vector<64x32xf32>
    %c0_12 = arith.constant 0 : index
    %c0_13 = arith.constant 0 : index
    %17 = vector.load %arg8[%c0_12, %c0_13] : memref<32x4xf32, #tpu.memory_space<vmem>>, vector<32x4xf32>
    %cst_14 = arith.constant dense<0.000000e+00> : vector<64x4xf32>
    %18 = tpu.matmul %16, %17, %cst_14 {dimension_numbers = #tpu.dot_dimension_numbers<[1], [0], [0], [1], [0, 0, 1, 1], [], []>} : vector<64x32xf32>, vector<32x4xf32>, vector<64x4xf32> -> vector<64x4xf32>
    %19 = vector.shape_cast %18 : vector<64x4xf32> to vector<8x8x4xf32>
    %cst_15 = arith.constant dense<0xFF800000> : vector<8x4xf32>
    %20 = vector.multi_reduction <maximumf>, %19, %cst_15 [1] : vector<8x8x4xf32> to vector<8x4xf32>
    %21 = vector.shape_cast %20 : vector<8x4xf32> to vector<8x1x4xf32>
    %22 = vector.broadcast %21 : vector<8x1x4xf32> to vector<8x8x4xf32>
    %23 = arith.subf %19, %22 : vector<8x8x4xf32>
    %24 = math.exp %23 : vector<8x8x4xf32>
    %cst_16 = arith.constant dense<0.000000e+00> : vector<8x4xf32>
    %25 = vector.multi_reduction <add>, %24, %cst_16 [1] : vector<8x8x4xf32> to vector<8x4xf32>
    %26 = vector.shape_cast %25 : vector<8x4xf32> to vector<8x1x4xf32>
    %27 = tpu.reciprocal %26 {approx = true} : vector<8x1x4xf32> -> vector<8x1x4xf32>
    %28 = vector.broadcast %27 : vector<8x1x4xf32> to vector<8x8x4xf32>
    %29 = arith.mulf %24, %28 : vector<8x8x4xf32>
    %30 = vector.shape_cast %29 : vector<8x8x4xf32> to vector<64x4xf32>
    %c0_17 = arith.constant 0 : index
    %c0_18 = arith.constant 0 : index
    %31 = vector.load %arg9[%c0_17, %c0_18] : memref<4x32xf32, #tpu.memory_space<vmem>>, vector<4x32xf32>
    %cst_19 = arith.constant dense<0.000000e+00> : vector<64x32xf32>
    %32 = tpu.matmul %30, %31, %cst_19 {dimension_numbers = #tpu.dot_dimension_numbers<[1], [0], [0], [1], [0, 0, 1, 1], [], []>} : vector<64x4xf32>, vector<4x32xf32>, vector<64x32xf32> -> vector<64x32xf32>
    %33 = vector.shape_cast %32 : vector<64x32xf32> to vector<8x8x32xf32>
    %34 = arith.mulf %33, %12 : vector<8x8x32xf32>
    %cst_20 = arith.constant dense<0.000000e+00> : vector<8x32xf32>
    %35 = vector.multi_reduction <add>, %34, %cst_20 [1] : vector<8x8x32xf32> to vector<8x32xf32>
    %36 = arith.truncf %35 : vector<8x32xf32> to vector<8x32xbf16>
    %c0_21 = arith.constant 0 : index
    %c0_22 = arith.constant 0 : index
    %37 = vector.load %arg6[%c0_21, %c0_22] : memref<32x32xbf16, #tpu.memory_space<vmem>>, vector<32x32xbf16>
    %cst_23 = arith.constant dense<0.000000e+00> : vector<8x32xf32>
    %38 = tpu.matmul %36, %37, %cst_23 {dimension_numbers = #tpu.dot_dimension_numbers<[1], [0], [0], [1], [0, 0, 1, 1], [], []>} : vector<8x32xbf16>, vector<32x32xbf16>, vector<8x32xf32> -> vector<8x32xf32>
    %c0_24 = arith.constant 0 : index
    %c0_25 = arith.constant 0 : index
    %39 = vector.load %arg7[%c0_24, %c0_25] : memref<1x32xf32, #tpu.memory_space<vmem>>, vector<1x32xf32>
    %40 = vector.broadcast %39 : vector<1x32xf32> to vector<8x32xf32>
    %41 = arith.addf %38, %40 : vector<8x32xf32>
    %42 = arith.addf %1, %41 : vector<8x32xf32>
    %c0_26 = arith.constant 0 : index
    %c0_27 = arith.constant 0 : index
    %43 = vector.load %arg10[%c0_26, %c0_27] : memref<8x32xf32, #tpu.memory_space<vmem>>, vector<8x32xf32>
    tpu.vector_store %arg10[%c0_26, %c0_27], %42 {strides = array<i32>} : memref<8x32xf32, #tpu.memory_space<vmem>>, vector<8x32xf32>,
    return
  }
  func.func @transform_0(%arg0: i32) -> (i32, i32) {
    %c0_i32 = arith.constant 0 : i32
    %c0_i32_0 = arith.constant 0 : i32
    return %arg0, %c0_i32 : i32, i32
  }
  func.func @transform_1(%arg0: i32) -> (i32, i32) {
    %c0_i32 = arith.constant 0 : i32
    %c0_i32_0 = arith.constant 0 : i32
    return %arg0, %c0_i32 : i32, i32
  }
  func.func @transform_2(%arg0: i32) -> (i32, i32) {
    %c0_i32 = arith.constant 0 : i32
    %c0_i32_0 = arith.constant 0 : i32
    %c0_i32_1 = arith.constant 0 : i32
    return %c0_i32, %c0_i32_0 : i32, i32
  }
  func.func @transform_3(%arg0: i32) -> (i32, i32) {
    %c0_i32 = arith.constant 0 : i32
    %c0_i32_0 = arith.constant 0 : i32
    %c0_i32_1 = arith.constant 0 : i32
    return %c0_i32, %c0_i32_0 : i32, i32
  }
  func.func @transform_4(%arg0: i32) -> (i32, i32) {
    %c0_i32 = arith.constant 0 : i32
    %c0_i32_0 = arith.constant 0 : i32
    %c0_i32_1 = arith.constant 0 : i32
    return %c0_i32, %c0_i32_0 : i32, i32
  }
  func.func @transform_5(%arg0: i32) -> (i32, i32) {
    %c0_i32 = arith.constant 0 : i32
    %c0_i32_0 = arith.constant 0 : i32
    %c0_i32_1 = arith.constant 0 : i32
    return %c0_i32, %c0_i32_0 : i32, i32
  }
  func.func @transform_6(%arg0: i32) -> (i32, i32) {
    %c0_i32 = arith.constant 0 : i32
    %c0_i32_0 = arith.constant 0 : i32
    %c0_i32_1 = arith.constant 0 : i32
    return %c0_i32, %c0_i32_0 : i32, i32
  }
  func.func @transform_7(%arg0: i32) -> (i32, i32) {
    %c0_i32 = arith.constant 0 : i32
    %c0_i32_0 = arith.constant 0 : i32
    %c0_i32_1 = arith.constant 0 : i32
    return %c0_i32, %c0_i32_0 : i32, i32
  }
  func.func @transform_8(%arg0: i32) -> (i32, i32) {
    %c0_i32 = arith.constant 0 : i32
    %c0_i32_0 = arith.constant 0 : i32
    %c0_i32_1 = arith.constant 0 : i32
    return %c0_i32, %c0_i32_0 : i32, i32
  }
  func.func @transform_9(%arg0: i32) -> (i32, i32) {
    %c0_i32 = arith.constant 0 : i32
    %c0_i32_0 = arith.constant 0 : i32
    return %arg0, %c0_i32 : i32, i32
  }
}

</mosaic_0001>

<llo_original>
// kernel: tpu_custom_call.1
$region0: #{tpu_custom_call.1}
  #allocation0 [shape = 'u32[]', space=smem, size = 0x4, offset = 0x4, fixed_abs, tag = 'smem constant byte address 0x4 - core index']
  #allocation1 [shape = 'u32[72,128]{1,0:T(1,128)}', space=vmem, size = 0x9000, scoped, tag = 'internal scratch']
  %s0 = inlined_call_operand.vmem [shape: bf16[64,32], index: 0, kind: input, shape index: {}]
  %s1 = inlined_call_operand.vmem [shape: f32[8,32], index: 1, kind: input, shape index: {}]
  %s2 = inlined_call_operand.vmem [shape: bf16[32,32], index: 2, kind: input, shape index: {}]
  %s3 = inlined_call_operand.vmem [shape: bf16[32,32], index: 3, kind: input, shape index: {}]
  %s4 = inlined_call_operand.vmem [shape: bf16[32,32], index: 4, kind: input, shape index: {}]
  %s5 = inlined_call_operand.vmem [shape: bf16[32,32], index: 5, kind: input, shape index: {}]
  %s6 = inlined_call_operand.vmem [shape: f32[1,32], index: 6, kind: input, shape index: {}]
  %s7 = inlined_call_operand.vmem [shape: f32[32,4], index: 7, kind: input, shape index: {}]
  %s8 = inlined_call_operand.vmem [shape: f32[4,32], index: 8, kind: input, shape index: {}]
  %s9 = inlined_call_operand.hbm [shape: f32[8,32], index: 9, kind: output, shape index: {}]
  %s10 = sld [smem:[#allocation0]]
  $region46: #{tpu_custom_call.1} parent=0
    _
  %s12 = ssub.s32 1, %s10
  %s13 = scalar_select 0, %s12, %s10
  $region1: #{tpu_custom_call.1} parent=0
    #allocation2 [shape = 'u8[4096]{0}', space=vmem, size = 0x1000, scoped, tag = 'output window, operand 0, single buffered']
    #allocation3 [shape = 's32[1]{0}', space=sflag, size = 0x4, scoped, tag = 'scoped memory for tpu_custom_call.1']
    %14 = vsyncpa [#allocation3], 0
    // Predicated region
    $region2: #{tpu_custom_call.1} parent=1 // pred_check
      _
    $region3: #{tpu_custom_call.1} parent=1 // pred_check_branch
      %16 = sbr.rel (0) target = $region5
    $region4: #{tpu_custom_call.1} parent=1 // pred_region
      _
    $region5: #{tpu_custom_call.1} parent=1 // pred_fallthru
      _
    // Predicated region
    $region6: #{tpu_custom_call.1} parent=1 // pred_check
      _
    $region7: #{tpu_custom_call.1} parent=1 // pred_check_branch
      %18 = sbr.rel (0) target = $region9
    $region8: #{tpu_custom_call.1} parent=1 // pred_region
      _
    $region9: #{tpu_custom_call.1} parent=1 // pred_fallthru
      _
    // Predicated region
    $region10: #{tpu_custom_call.1} parent=1 // pred_check
      _
    $region11: #{tpu_custom_call.1} parent=1 // pred_check_branch
      %20 = sbr.rel (0) target = $region13
    $region12: #{tpu_custom_call.1} parent=1 // pred_region
      _
    $region13: #{tpu_custom_call.1} parent=1 // pred_fallthru
      _
    // Predicated region
    $region14: #{tpu_custom_call.1} parent=1 // pred_check
      _
    $region15: #{tpu_custom_call.1} parent=1 // pred_check_branch
      %22 = sbr.rel (0) target = $region17
    $region16: #{tpu_custom_call.1} parent=1 // pred_region
      _
    $region17: #{tpu_custom_call.1} parent=1 // pred_fallthru
      _
    // Predicated region
    $region18: #{tpu_custom_call.1} parent=1 // pred_check
      _
    $region19: #{tpu_custom_call.1} parent=1 // pred_check_branch
      %24 = sbr.rel (0) target = $region21
    $region20: #{tpu_custom_call.1} parent=1 // pred_region
      _
    $region21: #{tpu_custom_call.1} parent=1 // pred_fallthru
      _
    // Predicated region
    $region22: #{tpu_custom_call.1} parent=1 // pred_check
      _
    $region23: #{tpu_custom_call.1} parent=1 // pred_check_branch
      %26 = sbr.rel (0) target = $region25
    $region24: #{tpu_custom_call.1} parent=1 // pred_region
      _
    $region25: #{tpu_custom_call.1} parent=1 // pred_fallthru
      _
    // Predicated region
    $region26: #{tpu_custom_call.1} parent=1 // pred_check
      _
    $region27: #{tpu_custom_call.1} parent=1 // pred_check_branch
      %28 = sbr.rel (0) target = $region29
    $region28: #{tpu_custom_call.1} parent=1 // pred_region
      _
    $region29: #{tpu_custom_call.1} parent=1 // pred_fallthru
      _
    // Predicated region
    $region30: #{tpu_custom_call.1} parent=1 // pred_check
      _
    $region31: #{tpu_custom_call.1} parent=1 // pred_check_branch
      %30 = sbr.rel (0) target = $region33
    $region32: #{tpu_custom_call.1} parent=1 // pred_region
      _
    $region33: #{tpu_custom_call.1} parent=1 // pred_fallthru
      _
    // Predicated region
    $region34: #{tpu_custom_call.1} parent=1 // pred_check
      _
    $region35: #{tpu_custom_call.1} parent=1 // pred_check_branch
      %32 = sbr.rel (0) target = $region37
    $region36: #{tpu_custom_call.1} parent=1 // pred_region
      _
    $region37: #{tpu_custom_call.1} parent=1 // pred_fallthru
      _
    %v34 = vld [vmem:[%s0] sm:$0xf]
    %v35 = vld [vmem:[%s0 + $0x4] sm:$0xf]
    %v36 = vld [vmem:[%s0 + $0x8] sm:$0xf]
    %v37 = vld [vmem:[%s0 + $0xc] sm:$0xf]
    %v38 = vld [vmem:[%s0 + $0x10] sm:$0xf]
    %v39 = vld [vmem:[%s0 + $0x14] sm:$0xf]
    %v40 = vld [vmem:[%s0 + $0x18] sm:$0xf]
    %v41 = vld [vmem:[%s0 + $0x1c] sm:$0xf]
    %v42 = vld [vmem:[%s1] sm:$0xff]
    %v43 = vpack.c.bf16 %v42, %v42
    %v44 = vld [vmem:[%s3] sm:$0xf]
    %v45 = vld [vmem:[%s3 + $0x4] sm:$0xf]
    %v46 = vld [vmem:[%s3 + $0x8] sm:$0xf]
    %v47 = vld [vmem:[%s3 + $0xc] sm:$0xf]
    %v56 = vunpack.c.l.b16 %v34
    %v57 = vunpack.c.l.b16 %v35
    %v58 = vunpack.c.l.b16 %v36
    %v59 = vunpack.c.l.b16 %v37
    %v60 = vunpack.c.l.b16 %v38
    %v61 = vunpack.c.l.b16 %v39
    %v62 = vunpack.c.l.b16 %v40
    %v63 = vunpack.c.l.b16 %v41
    %v64 = vpack.c.b16 %v57, %v56
    %v65 = vpack.c.b16 %v59, %v58
    %v66 = vpack.c.b16 %v61, %v60
    %v67 = vpack.c.b16 %v63, %v62
    %v72 = vunpack.c.l.b16 %v44
    %v73 = vunpack.c.l.b16 %v45
    %v74 = vunpack.c.l.b16 %v46
    %v75 = vunpack.c.l.b16 %v47
    %v76 = vpack.c.b16 %v73, %v72
    %v77 = vpack.c.b16 %v75, %v74
    %vm80 = vcmask 261120
    %v82 = vsel %vm80, %v64, 0
    %v85 = vsel %vm80, %v65, 0
    %v88 = vsel %vm80, %v66, 0
    %v91 = vsel %vm80, %v67, 0
    %93 = vmatpush.bf16.msra.mxu0 0
    %94 = vmatpush.bf16.msra.mxu0 0
    %95 = vmatpush.bf16.msra.mxu0 0
    %96 = vmatpush.bf16.msra.mxu0 0
    %97 = vmatpush.bf16.msra.mxu0 0
    %98 = vmatpush.bf16.msra.mxu0 0
    %99 = vmatpush.bf16.msra.mxu0 %v77
    %100 = vmatpush.bf16.msra.mxu0 %v76
    %101 = vmatmul.bf16.gmra.mxu0 %v82
    %v102 = vpop.f32.mrf.mxu0
    %v103 = vadd.f32 0.0, %v102
    %v104 = vpop.f32.mrf.mxu0
    %v105 = vadd.f32 0.0, %v104
    %106 = vmatmul.bf16.gmra.mxu0 %v85
    %v107 = vpop.f32.mrf.mxu0
    %v108 = vadd.f32 0.0, %v107
    %v109 = vpop.f32.mrf.mxu0
    %v110 = vadd.f32 0.0, %v109
    %111 = vmatmul.bf16.gmra.mxu0 %v88
    %v112 = vpop.f32.mrf.mxu0
    %v113 = vadd.f32 0.0, %v112
    %v114 = vpop.f32.mrf.mxu0
    %v115 = vadd.f32 0.0, %v114
    %116 = vmatmul.bf16.gmra.mxu0 %v91
    %v117 = vpop.f32.mrf.mxu0
    %v118 = vadd.f32 0.0, %v117
    %v119 = vpop.f32.mrf.mxu0
    %v120 = vadd.f32 0.0, %v119
    %121 = vdwg.mxu0
    %v122 = vld [vmem:[%s4] sm:$0xf]
    %v123 = vld [vmem:[%s4 + $0x4] sm:$0xf]
    %v124 = vld [vmem:[%s4 + $0x8] sm:$0xf]
    %v125 = vld [vmem:[%s4 + $0xc] sm:$0xf]
    %v130 = vunpack.c.l.b16 %v122
    %v131 = vunpack.c.l.b16 %v123
    %v132 = vunpack.c.l.b16 %v124
    %v133 = vunpack.c.l.b16 %v125
    %v134 = vpack.c.b16 %v131, %v130
    %v135 = vpack.c.b16 %v133, %v132
    %138 = vmatpush.bf16.msra.mxu0 0
    %139 = vmatpush.bf16.msra.mxu0 0
    %140 = vmatpush.bf16.msra.mxu0 0
    %141 = vmatpush.bf16.msra.mxu0 0
    %142 = vmatpush.bf16.msra.mxu0 0
    %143 = vmatpush.bf16.msra.mxu0 0
    %144 = vmatpush.bf16.msra.mxu0 %v135
    %145 = vmatpush.bf16.msra.mxu0 %v134
    %146 = vmatmul.bf16.gmra.mxu0 %v82
    %v147 = vpop.f32.mrf.mxu0
    %v148 = vadd.f32 0.0, %v147
    %v149 = vpop.f32.mrf.mxu0
    %v150 = vadd.f32 0.0, %v149
    %151 = vmatmul.bf16.gmra.mxu0 %v85
    %v152 = vpop.f32.mrf.mxu0
    %v153 = vadd.f32 0.0, %v152
    %v154 = vpop.f32.mrf.mxu0
    %v155 = vadd.f32 0.0, %v154
    %156 = vmatmul.bf16.gmra.mxu0 %v88
    %v157 = vpop.f32.mrf.mxu0
    %v158 = vadd.f32 0.0, %v157
    %v159 = vpop.f32.mrf.mxu0
    %v160 = vadd.f32 0.0, %v159
    %161 = vmatmul.bf16.gmra.mxu0 %v91
    %v162 = vpop.f32.mrf.mxu0
    %v163 = vadd.f32 0.0, %v162
    %v164 = vpop.f32.mrf.mxu0
    %v165 = vadd.f32 0.0, %v164
    %166 = vdwg.mxu0
    %v167 = vld [vmem:[%s2] sm:$0xf]
    %v168 = vld [vmem:[%s2 + $0x4] sm:$0xf]
    %v169 = vld [vmem:[%s2 + $0x8] sm:$0xf]
    %v170 = vld [vmem:[%s2 + $0xc] sm:$0xf]
    %v175 = vunpack.c.l.b16 %v167
    %v176 = vunpack.c.l.b16 %v168
    %v177 = vunpack.c.l.b16 %v169
    %v178 = vunpack.c.l.b16 %v170
    %v179 = vpack.c.b16 %v176, %v175
    %v180 = vpack.c.b16 %v178, %v177
    %v184 = vsel %vm80, %v43, 0
    %186 = vmatpush.bf16.msra.mxu0 0
    %187 = vmatpush.bf16.msra.mxu0 0
    %188 = vmatpush.bf16.msra.mxu0 0
    %189 = vmatpush.bf16.msra.mxu0 0
    %190 = vmatpush.bf16.msra.mxu0 0
    %191 = vmatpush.bf16.msra.mxu0 0
    %192 = vmatpush.bf16.msra.mxu0 %v180
    %193 = vmatpush.bf16.msra.mxu0 %v179
    %194 = vmatmul.bf16.gmra.mxu0 %v184
    %v195 = vpop.f32.mrf.mxu0
    %v196 = vadd.f32 0.0, %v195
    %v197 = vpop.f32.mrf.mxu0
    %198 = vdwg.mxu0
    %v199 = vmul.f32 %v196, 0.35355338
    %v201 = vrot.slane %v199, 1
    %v202 = vrot.slane %v199, 2
    %v203 = vrot.slane %v199, 3
    %v204 = vrot.slane %v199, 4
    %v205 = vrot.slane %v199, 5
    %v206 = vrot.slane %v199, 6
    %v207 = vrot.slane %v199, 7
    %v208 = vperm.slane %v199, 0
    %v209 = vperm.slane %v201, 0
    %v210 = vperm.slane %v202, 0
    %v211 = vperm.slane %v203, 0
    %v212 = vperm.slane %v204, 0
    %v213 = vperm.slane %v205, 0
    %v214 = vperm.slane %v206, 0
    %v215 = vperm.slane %v207, 0
    %v224 = vmul.f32 %v103, %v208
    %v225 = vmul.f32 %v105, %v209
    %v226 = vmul.f32 %v108, %v210
    %v227 = vmul.f32 %v110, %v211
    %v228 = vmul.f32 %v113, %v212
    %v229 = vmul.f32 %v115, %v213
    %v230 = vmul.f32 %v118, %v214
    %v231 = vmul.f32 %v120, %v215
    %v232 = vld [vmem:[%s7] sm:$0xff]
    %v233 = vld [vmem:[%s7 + $0x8] sm:$0xff]
    %v234 = vld [vmem:[%s7 + $0x10] sm:$0xff]
    %v235 = vld [vmem:[%s7 + $0x18] sm:$0xff]
    %v237 = vsel %vm80, %v224, 0
    %v240 = vsel %vm80, %v225, 0
    %v243 = vsel %vm80, %v226, 0
    %v246 = vsel %vm80, %v227, 0
    %v249 = vsel %vm80, %v228, 0
    %v252 = vsel %vm80, %v229, 0
    %v255 = vsel %vm80, %v230, 0
    %v258 = vsel %vm80, %v231, 0
    %260 = vmatpush.msra.mxu0 0.0
    %261 = vmatpush.msra.mxu0 0.0
    %262 = vmatpush.msra.mxu0 0.0
    %263 = vmatpush.msra.mxu0 0.0
    %264 = vmatpush.msra.mxu0 0.0
    %265 = vmatpush.msra.mxu0 0.0
    %266 = vmatpush.msra.mxu0 0.0
    %267 = vmatpush.msra.mxu0 0.0
    %268 = vmatpush.msra.mxu0 0.0
    %269 = vmatpush.msra.mxu0 0.0
    %270 = vmatpush.msra.mxu0 0.0
    %271 = vmatpush.msra.mxu0 0.0
    %272 = vmatpush.msra.mxu0 %v235
    %273 = vmatpush.msra.mxu0 %v234
    %274 = vmatpush.msra.mxu0 %v233
    %275 = vmatpush.msra.mxu0 %v232
    %276 = vmatmul.f32.gmra.mxu0 %v237
    %v277 = vpop.f32.mrf.mxu0
    %v278 = vadd.f32 0.0, %v277
    %279 = vmatmul.f32.gmra.mxu0 %v240
    %v280 = vpop.f32.mrf.mxu0
    %v281 = vadd.f32 0.0, %v280
    %282 = vmatmul.f32.gmra.mxu0 %v243
    %v283 = vpop.f32.mrf.mxu0
    %v284 = vadd.f32 0.0, %v283
    %285 = vmatmul.f32.gmra.mxu0 %v246
    %v286 = vpop.f32.mrf.mxu0
    %v287 = vadd.f32 0.0, %v286
    %288 = vmatmul.f32.gmra.mxu0 %v249
    %v289 = vpop.f32.mrf.mxu0
    %v290 = vadd.f32 0.0, %v289
    %291 = vmatmul.f32.gmra.mxu0 %v252
    %v292 = vpop.f32.mrf.mxu0
    %v293 = vadd.f32 0.0, %v292
    %294 = vmatmul.f32.gmra.mxu0 %v255
    %v295 = vpop.f32.mrf.mxu0
    %v296 = vadd.f32 0.0, %v295
    %297 = vmatmul.f32.gmra.mxu0 %v258
    %v298 = vpop.f32.mrf.mxu0
    %v299 = vadd.f32 0.0, %v298
    %300 = vdwg.mxu0
    %vm301 = vcmask 31744
    %v302 = vsel %vm301, %v278, -inf
    %v303 = vrot.slane %v302, 4
    %v304 = vmax.f32 %v302, %v303
    %v305 = vrot.slane %v304, 2
    %v306 = vmax.f32 %v304, %v305
    %v307 = vrot.slane %v306, 1
    %v308 = vmax.f32 %v306, %v307
    %v309 = vsel %vm301, %v281, -inf
    %v310 = vrot.slane %v309, 4
    %v311 = vmax.f32 %v309, %v310
    %v312 = vrot.slane %v311, 2
    %v313 = vmax.f32 %v311, %v312
    %v314 = vrot.slane %v313, 1
    %v315 = vmax.f32 %v313, %v314
    %v316 = vsel %vm301, %v284, -inf
    %v317 = vrot.slane %v316, 4
    %v318 = vmax.f32 %v316, %v317
    %v319 = vrot.slane %v318, 2
    %v320 = vmax.f32 %v318, %v319
    %v321 = vrot.slane %v320, 1
    %v322 = vmax.f32 %v320, %v321
    %v323 = vsel %vm301, %v287, -inf
    %v324 = vrot.slane %v323, 4
    %v325 = vmax.f32 %v323, %v324
    %v326 = vrot.slane %v325, 2
    %v327 = vmax.f32 %v325, %v326
    %v328 = vrot.slane %v327, 1
    %v329 = vmax.f32 %v327, %v328
    %v330 = vsel %vm301, %v290, -inf
    %v331 = vrot.slane %v330, 4
    %v332 = vmax.f32 %v330, %v331
    %v333 = vrot.slane %v332, 2
    %v334 = vmax.f32 %v332, %v333
    %v335 = vrot.slane %v334, 1
    %v336 = vmax.f32 %v334, %v335
    %v337 = vsel %vm301, %v293, -inf
    %v338 = vrot.slane %v337, 4
    %v339 = vmax.f32 %v337, %v338
    %v340 = vrot.slane %v339, 2
    %v341 = vmax.f32 %v339, %v340
    %v342 = vrot.slane %v341, 1
    %v343 = vmax.f32 %v341, %v342
    %v344 = vsel %vm301, %v296, -inf
    %v345 = vrot.slane %v344, 4
    %v346 = vmax.f32 %v344, %v345
    %v347 = vrot.slane %v346, 2
    %v348 = vmax.f32 %v346, %v347
    %v349 = vrot.slane %v348, 1
    %v350 = vmax.f32 %v348, %v349
    %v351 = vsel %vm301, %v299, -inf
    %v352 = vrot.slane %v351, 4
    %v353 = vmax.f32 %v351, %v352
    %v354 = vrot.slane %v353, 2
    %v355 = vmax.f32 %v353, %v354
    %v356 = vrot.slane %v355, 1
    %v357 = vmax.f32 %v355, %v356
    %v358 = vsub.f32 %v278, %v308
    %v359 = vsub.f32 %v281, %v315
    %v360 = vsub.f32 %v284, %v322
    %v361 = vsub.f32 %v287, %v329
    %v362 = vsub.f32 %v290, %v336
    %v363 = vsub.f32 %v293, %v343
    %v364 = vsub.f32 %v296, %v350
    %v365 = vsub.f32 %v299, %v357
    %v366 = vmul.f32 %v358, 1.442695
    %v367 = vpow.pop %v366
    %v368 = vmul.f32 %v359, 1.442695
    %v369 = vpow.pop %v368
    %v370 = vmul.f32 %v360, 1.442695
    %v371 = vpow.pop %v370
    %v372 = vmul.f32 %v361, 1.442695
    %v373 = vpow.pop %v372
    %v374 = vmul.f32 %v362, 1.442695
    %v375 = vpow.pop %v374
    %v376 = vmul.f32 %v363, 1.442695
    %v377 = vpow.pop %v376
    %v378 = vmul.f32 %v364, 1.442695
    %v379 = vpow.pop %v378
    %v380 = vmul.f32 %v365, 1.442695
    %v381 = vpow.pop %v380
    %v382 = vsel %vm301, %v367, 0.0
    %v383 = vrot.slane %v382, 4
    %v384 = vadd.f32 %v382, %v383
    %v385 = vrot.slane %v384, 2
    %v386 = vadd.f32 %v384, %v385
    %v387 = vrot.slane %v386, 1
    %v388 = vadd.f32 %v386, %v387
    %v389 = vsel %vm301, %v369, 0.0
    %v390 = vrot.slane %v389, 4
    %v391 = vadd.f32 %v389, %v390
    %v392 = vrot.slane %v391, 2
    %v393 = vadd.f32 %v391, %v392
    %v394 = vrot.slane %v393, 1
    %v395 = vadd.f32 %v393, %v394
    %v396 = vsel %vm301, %v371, 0.0
    %v397 = vrot.slane %v396, 4
    %v398 = vadd.f32 %v396, %v397
    %v399 = vrot.slane %v398, 2
    %v400 = vadd.f32 %v398, %v399
    %v401 = vrot.slane %v400, 1
    %v402 = vadd.f32 %v400, %v401
    %v403 = vsel %vm301, %v373, 0.0
    %v404 = vrot.slane %v403, 4
    %v405 = vadd.f32 %v403, %v404
    %v406 = vrot.slane %v405, 2
    %v407 = vadd.f32 %v405, %v406
    %v408 = vrot.slane %v407, 1
    %v409 = vadd.f32 %v407, %v408
    %v410 = vsel %vm301, %v375, 0.0
    %v411 = vrot.slane %v410, 4
    %v412 = vadd.f32 %v410, %v411
    %v413 = vrot.slane %v412, 2
    %v414 = vadd.f32 %v412, %v413
    %v415 = vrot.slane %v414, 1
    %v416 = vadd.f32 %v414, %v415
    %v417 = vsel %vm301, %v377, 0.0
    %v418 = vrot.slane %v417, 4
    %v419 = vadd.f32 %v417, %v418
    %v420 = vrot.slane %v419, 2
    %v421 = vadd.f32 %v419, %v420
    %v422 = vrot.slane %v421, 1
    %v423 = vadd.f32 %v421, %v422
    %v424 = vsel %vm301, %v379, 0.0
    %v425 = vrot.slane %v424, 4
    %v426 = vadd.f32 %v424, %v425
    %v427 = vrot.slane %v426, 2
    %v428 = vadd.f32 %v426, %v427
    %v429 = vrot.slane %v428, 1
    %v430 = vadd.f32 %v428, %v429
    %v431 = vsel %vm301, %v381, 0.0
    %v432 = vrot.slane %v431, 4
    %v433 = vadd.f32 %v431, %v432
    %v434 = vrot.slane %v433, 2
    %v435 = vadd.f32 %v433, %v434
    %v436 = vrot.slane %v435, 1
    %v437 = vadd.f32 %v435, %v436
    %v438 = vrcp.pop %v388
    %v439 = vrcp.pop %v395
    %v440 = vrcp.pop %v402
    %v441 = vrcp.pop %v409
    %v442 = vrcp.pop %v416
    %v443 = vrcp.pop %v423
    %v444 = vrcp.pop %v430
    %v445 = vrcp.pop %v437
    %v446 = vmul.f32 %v367, %v438
    %v447 = vmul.f32 %v369, %v439
    %v448 = vmul.f32 %v371, %v440
    %v449 = vmul.f32 %v373, %v441
    %v450 = vmul.f32 %v375, %v442
    %v451 = vmul.f32 %v377, %v443
    %v452 = vmul.f32 %v379, %v444
    %v453 = vmul.f32 %v381, %v445
    %v454 = vld [vmem:[%s8] sm:$0xf]
    %v456 = vsel %vm301, %v446, 0
    %v459 = vsel %vm301, %v447, 0
    %v462 = vsel %vm301, %v448, 0
    %v465 = vsel %vm301, %v449, 0
    %v468 = vsel %vm301, %v450, 0
    %v471 = vsel %vm301, %v451, 0
    %v474 = vsel %vm301, %v452, 0
    %v477 = vsel %vm301, %v453, 0
    %vm479 = vcmask 1043456
    %v481 = vsel %vm479, %v454, 0
    %483 = vmatpush.msra.mxu0 0.0
    %484 = vmatpush.msra.mxu0 0.0
    %485 = vmatpush.msra.mxu0 0.0
    %486 = vmatpush.msra.mxu0 0.0
    %487 = vmatpush.msra.mxu0 0.0
    %488 = vmatpush.msra.mxu0 0.0
    %489 = vmatpush.msra.mxu0 0.0
    %490 = vmatpush.msra.mxu0 0.0
    %491 = vmatpush.msra.mxu0 0.0
    %492 = vmatpush.msra.mxu0 0.0
    %493 = vmatpush.msra.mxu0 0.0
    %494 = vmatpush.msra.mxu0 0.0
    %495 = vmatpush.msra.mxu0 0.0
    %496 = vmatpush.msra.mxu0 0.0
    %497 = vmatpush.msra.mxu0 0.0
    %498 = vmatpush.msra.mxu0 %v481
    %499 = vmatmul.f32.gmra.mxu0 %v456
    %v500 = vpop.f32.mrf.mxu0
    %v501 = vadd.f32 0.0, %v500
    %502 = vmatmul.f32.gmra.mxu0 %v459
    %v503 = vpop.f32.mrf.mxu0
    %v504 = vadd.f32 0.0, %v503
    %505 = vmatmul.f32.gmra.mxu0 %v462
    %v506 = vpop.f32.mrf.mxu0
    %v507 = vadd.f32 0.0, %v506
    %508 = vmatmul.f32.gmra.mxu0 %v465
    %v509 = vpop.f32.mrf.mxu0
    %v510 = vadd.f32 0.0, %v509
    %511 = vmatmul.f32.gmra.mxu0 %v468
    %v512 = vpop.f32.mrf.mxu0
    %v513 = vadd.f32 0.0, %v512
    %514 = vmatmul.f32.gmra.mxu0 %v471
    %v515 = vpop.f32.mrf.mxu0
    %v516 = vadd.f32 0.0, %v515
    %517 = vmatmul.f32.gmra.mxu0 %v474
    %v518 = vpop.f32.mrf.mxu0
    %v519 = vadd.f32 0.0, %v518
    %520 = vmatmul.f32.gmra.mxu0 %v477
    %v521 = vpop.f32.mrf.mxu0
    %v522 = vadd.f32 0.0, %v521
    %523 = vdwg.mxu0
    %v524 = vmul.f32 %v501, %v148
    %v525 = vmul.f32 %v504, %v150
    %v526 = vmul.f32 %v507, %v153
    %v527 = vmul.f32 %v510, %v155
    %v528 = vmul.f32 %v513, %v158
    %v529 = vmul.f32 %v516, %v160
    %v530 = vmul.f32 %v519, %v163
    %v531 = vmul.f32 %v522, %v165
    %v532 = vsel %vm80, %v524, 0.0
    %v533 = vrot.slane %v532, 4
    %v534 = vadd.f32 %v532, %v533
    %v535 = vrot.slane %v534, 2
    %v536 = vadd.f32 %v534, %v535
    %v537 = vrot.slane %v536, 1
    %v538 = vadd.f32 %v536, %v537
    %v539 = vsel %vm80, %v525, 0.0
    %v540 = vrot.slane %v539, 4
    %v541 = vadd.f32 %v539, %v540
    %v542 = vrot.slane %v541, 2
    %v543 = vadd.f32 %v541, %v542
    %v544 = vrot.slane %v543, 1
    %v545 = vadd.f32 %v543, %v544
    %v546 = vsel %vm80, %v526, 0.0
    %v547 = vrot.slane %v546, 4
    %v548 = vadd.f32 %v546, %v547
    %v549 = vrot.slane %v548, 2
    %v550 = vadd.f32 %v548, %v549
    %v551 = vrot.slane %v550, 1
    %v552 = vadd.f32 %v550, %v551
    %v553 = vsel %vm80, %v527, 0.0
    %v554 = vrot.slane %v553, 4
    %v555 = vadd.f32 %v553, %v554
    %v556 = vrot.slane %v555, 2
    %v557 = vadd.f32 %v555, %v556
    %v558 = vrot.slane %v557, 1
    %v559 = vadd.f32 %v557, %v558
    %v560 = vsel %vm80, %v528, 0.0
    %v561 = vrot.slane %v560, 4
    %v562 = vadd.f32 %v560, %v561
    %v563 = vrot.slane %v562, 2
    %v564 = vadd.f32 %v562, %v563
    %v565 = vrot.slane %v564, 1
    %v566 = vadd.f32 %v564, %v565
    %v567 = vsel %vm80, %v529, 0.0
    %v568 = vrot.slane %v567, 4
    %v569 = vadd.f32 %v567, %v568
    %v570 = vrot.slane %v569, 2
    %v571 = vadd.f32 %v569, %v570
    %v572 = vrot.slane %v571, 1
    %v573 = vadd.f32 %v571, %v572
    %v574 = vsel %vm80, %v530, 0.0
    %v575 = vrot.slane %v574, 4
    %v576 = vadd.f32 %v574, %v575
    %v577 = vrot.slane %v576, 2
    %v578 = vadd.f32 %v576, %v577
    %v579 = vrot.slane %v578, 1
    %v580 = vadd.f32 %v578, %v579
    %v581 = vsel %vm80, %v531, 0.0
    %v582 = vrot.slane %v581, 4
    %v583 = vadd.f32 %v581, %v582
    %v584 = vrot.slane %v583, 2
    %v585 = vadd.f32 %v583, %v584
    %v586 = vrot.slane %v585, 1
    %v587 = vadd.f32 %v585, %v586
    %v588 = vpack.c.bf16 %v538, %v538
    %v589 = vpack.c.bf16 %v545, %v545
    %v590 = vpack.c.bf16 %v552, %v552
    %v591 = vpack.c.bf16 %v559, %v559
    %v592 = vpack.c.bf16 %v566, %v566
    %v593 = vpack.c.bf16 %v573, %v573
    %v594 = vpack.c.bf16 %v580, %v580
    %v595 = vpack.c.bf16 %v587, %v587
    %v596 = vld [vmem:[%s5] sm:$0xf]
    %v597 = vld [vmem:[%s5 + $0x4] sm:$0xf]
    %v598 = vld [vmem:[%s5 + $0x8] sm:$0xf]
    %v599 = vld [vmem:[%s5 + $0xc] sm:$0xf]
    %v600 = vld [vmem:[%s6] sm:$0x1]
    %v602 = vperm.slane %v600, 0
    %v612 = vunpack.c.l.b16 %v588
    %v613 = vunpack.c.l.b16 %v589
    %v614 = vunpack.c.l.b16 %v590
    %v615 = vunpack.c.l.b16 %v591
    %v616 = vunpack.c.l.b16 %v592
    %v617 = vunpack.c.l.b16 %v593
    %v618 = vunpack.c.l.b16 %v594
    %v619 = vunpack.c.l.b16 %v595
    %vm620 = vcmask 1041409
    %v621 = vsel %vm620, %v613, %v612
    %vm622 = vcmask 1042434
    %v623 = vsel %vm622, %v614, %v621
    %vm624 = vcmask 1043459
    %v625 = vsel %vm624, %v615, %v623
    %vm626 = vcmask 1044484
    %v627 = vsel %vm626, %v616, %v625
    %vm628 = vcmask 1045509
    %v629 = vsel %vm628, %v617, %v627
    %vm630 = vcmask 1046534
    %v631 = vsel %vm630, %v618, %v629
    %vm632 = vcmask 1047559
    %v633 = vsel %vm632, %v619, %v631
    %v634 = vpack.c.b16 %v633, %v633
    %v639 = vunpack.c.l.b16 %v596
    %v640 = vunpack.c.l.b16 %v597
    %v641 = vunpack.c.l.b16 %v598
    %v642 = vunpack.c.l.b16 %v599
    %v643 = vpack.c.b16 %v640, %v639
    %v644 = vpack.c.b16 %v642, %v641
    %v648 = vsel %vm80, %v634, 0
    %650 = vmatpush.bf16.msra.mxu0 0
    %651 = vmatpush.bf16.msra.mxu0 0
    %652 = vmatpush.bf16.msra.mxu0 0
    %653 = vmatpush.bf16.msra.mxu0 0
    %654 = vmatpush.bf16.msra.mxu0 0
    %655 = vmatpush.bf16.msra.mxu0 0
    %656 = vmatpush.bf16.msra.mxu0 %v644
    %657 = vmatpush.bf16.msra.mxu0 %v643
    %658 = vmatmul.bf16.gmra.mxu0 %v648
    %v659 = vpop.f32.mrf.mxu0
    %v660 = vadd.f32 %v602, %v659
    %v661 = vpop.f32.mrf.mxu0
    %662 = vdwg.mxu0
    %v663 = vadd.f32 %v42, %v660
    %664 = vst.msk [vmem:[#allocation2] sm:$0xff] %vm80, %v663
    // Predicated region
    $region38: #{tpu_custom_call.1} parent=1 // pred_check
      _
    $region39: #{tpu_custom_call.1} parent=1 // pred_check_branch
      %666 = sbr.rel (0) target = $region41
    $region40: #{tpu_custom_call.1} parent=1 // pred_region
      %668 = vsyncadd [#allocation3], 0
      %s670 = sshll.u32 [#allocation2], 4
      %s671 = int_to_ptr.vmem [resolvable:$true] %s670
      %s672 = sshll.u32 %s9, 4
      %s673 = int_to_ptr.hbm [resolvable:$true] %s672
      %675 = dma.vmem_to_hbm [thread:$0]  %s671, 128, %s673, [#allocation3]
    $region41: #{tpu_custom_call.1} parent=1 // pred_fallthru
      _
    // Predicated region
    $region42: #{tpu_custom_call.1} parent=1 // pred_check
      _
    $region43: #{tpu_custom_call.1} parent=1 // pred_check_branch
      %677 = sbr.rel (0) target = $region45
    $region44: #{tpu_custom_call.1} parent=1 // pred_region
      %679 = dma.done [#allocation3], 128
    $region45: #{tpu_custom_call.1} parent=1 // pred_fallthru
      _
    %680 = vsyncpa [#allocation3], 1

</llo_original>
